<compile_context>
chip_gen: v5e
topology: v5e:2x2
jax: 0.10.0
libtpu: 0.0.40
codegen_flags: <defaults>
</compile_context>

<pallas_src>
import jax
import jax.numpy as jnp
from jax.experimental import pallas as pl
from jax.experimental.pallas import tpu as pltpu

_LANES = 128
_TC_CAP = 2048                      # max lanes per tile
_TILE_BUDGET_BYTES = 4 * 1024 * 1024   # target bytes per (tb, tc) tile (widest dtype)
_SMALL_BYTES = 2 * 1024 * 1024      # below this, plain jnp multiply wins
_BIG_BYTES = 8 * 1024 * 1024        # above this, force >= _MIN_BLOCKS grid steps
_MIN_BLOCKS = 8


def _fusion_kernel(x_ref, w_ref, o_ref):
    # x_ref / o_ref: (TB, TC) tile of the flattened input/output.
    # w_ref: (1, TC) shared weights tile, broadcast over the TB sublanes.
    # Cast in-kernel so mixed-precision inputs stream HBM at native width.
    # NOTE: edge blocks past B / C may contain unspecified data, but for this
    # pure elementwise op they only feed output lanes that Pallas masks on the
    # writeback, so they never reach HBM.  Keep that invariant if fusing more
    # ops into this kernel.
    x = x_ref[...].astype(o_ref.dtype)
    w = w_ref[...].astype(o_ref.dtype)
    o_ref[...] = x * w


def _round_up(v, m):
    return ((v + m - 1) // m) * m


def _choose_tiles(B, C, x_itemsize, out_itemsize):
    """Pick a lane-dense (tb, tc) tile: big enough to amortize per-step
    overhead, small enough to keep several grid blocks on large inputs."""
    widest = max(x_itemsize, out_itemsize)
    # Sub-32-bit dtypes pack along sublanes: min sublane tile is 8/16/32 for
    # 4/2/1-byte elements.  Use the strictest requirement among x / out.
    sub_align = max(8, 32 // min(x_itemsize, out_itemsize))

    # Lane (feature) axis: full C when it fits (always a legal block dim),
    # otherwise a 128-multiple cap; the last feature block is masked if ragged.
    tc = C if C <= _TC_CAP else _TC_CAP

    # Sublane (batch) axis from the per-tile byte budget.
    max_rows = max(1, _TILE_BUDGET_BYTES // (tc * widest))
    if B <= max_rows:
        tb = B                                         # full dim: always legal
    else:
        tb = max(sub_align, (max_rows // sub_align) * sub_align)

    # For large inputs keep >= _MIN_BLOCKS grid steps so the in-DMA -> compute
    # -> out-DMA pipeline overlaps and megacore (v7x) has >= 2 blocks to shard.
    total_bytes = B * C * (x_itemsize + out_itemsize)
    if total_bytes > _BIG_BYTES:
        while pl.cdiv(B, tb) * pl.cdiv(C, tc) < _MIN_BLOCKS:
            if tb >= 2 * sub_align:
                tb = _round_up(tb // 2, sub_align)
            elif tc >= 2 * _LANES:
                tc = _round_up(tc // 2, _LANES)
            else:
                break
    return tb, tc


def fusion_layer(x, weights, *, force_pallas=False):
    """FusionLayer.forward: x * weights, weights broadcast over the batch axis.

    x: (B, n, h, w), weights: (1, n, h, w).
    """
    B, n, h, w = x.shape
    assert weights.shape == (1, n, h, w), weights.shape

    out_dtype = jnp.result_type(x.dtype, weights.dtype)
    x_itemsize = jnp.dtype(x.dtype).itemsize
    w_itemsize = jnp.dtype(weights.dtype).itemsize
    out_itemsize = jnp.dtype(out_dtype).itemsize

    C = n * h * w
    total_bytes = B * C * (x_itemsize + out_itemsize)

    # Small-size dispatch: the custom-call boundary + per-step overhead dwarfs
    # the work at the module's native (~KiB) sizes, and it blocks XLA fusion.
    if total_bytes < _SMALL_BYTES and not force_pallas:
        return (x * weights).astype(out_dtype)

    # Flatten to lane-dense 2D (free metadata reshape; no HBM pass, no pad).
    x2 = x.reshape(B, C)
    w2 = weights.reshape(1, C)

    tb, tc = _choose_tiles(B, C, x_itemsize, out_itemsize)
    nj = pl.cdiv(C, tc)   # feature tiles (outer grid axis)
    ni = pl.cdiv(B, tb)   # batch tiles   (inner grid axis)

    # VMEM limit sized from the actual double-buffered footprint (+headroom),
    # not a blanket reservation, so neighboring fusions keep their scratch.
    footprint = 2 * (tb * tc * x_itemsize + tb * tc * out_itemsize
                     + tc * w_itemsize)
    vmem_limit = min(48 * 1024 * 1024,
                     max(4 * 1024 * 1024, 2 * footprint + 2 * 1024 * 1024))

    out2 = pl.pallas_call(
        _fusion_kernel,
        out_shape=jax.ShapeDtypeStruct((B, C), out_dtype),
        grid_spec=pltpu.PrefetchScalarGridSpec(
            num_scalar_prefetch=0,
            grid=(nj, ni),   # feature outer, batch inner
            in_specs=[
                # x: one (tb, tc) lane-dense tile per step.
                pl.BlockSpec((tb, tc), lambda j, i: (i, j)),
                # weights: block index depends only on the OUTER (feature)
                # axis, so the tile stays resident across the inner batch loop
                # (no per-step weights DMA).
                pl.BlockSpec((1, tc), lambda j, i: (0, j)),
            ],
            out_specs=pl.BlockSpec((tb, tc), lambda j, i: (i, j)),
        ),
        compiler_params=pltpu.CompilerParams(
            # Both axes are independent -> shard across TensorCores (v7x).
            dimension_semantics=("parallel", "parallel"),
            vmem_limit_bytes=vmem_limit,
        ),
    )(x2, w2)

    return out2.reshape(B, n, h, w)


if __name__ == "__main__":
    key = jax.random.PRNGKey(0)
    kx, kw = jax.random.split(key)

    # Small shapes consistent with the module: batch=2, n=4 channels, h=w=16.
    B, n, h, w = 2, 4, 16, 16
    x = jax.random.normal(kx, (B, n, h, w), dtype=jnp.float32)
    # nn.Parameter(torch.FloatTensor(1,n,h,w)) is uninitialized in PyTorch;
    # initialize deterministically from PRNGKey(0) instead.
    weights = jax.random.normal(kw, (1, n, h, w), dtype=jnp.float32)

    # force_pallas=True so the kernel itself runs at these (small) demo shapes;
    # the default dispatch would use the fused XLA multiply here.
    out = jax.block_until_ready(fusion_layer(x, weights, force_pallas=True))
    ref = x * weights
    assert out.shape == (B, n, h, w)
    assert jnp.allclose(out, ref, atol=1e-6, rtol=1e-6)

    # Ragged feature axis (C = 3*5*7 = 105, not a multiple of 128) exercises
    # the no-pad path with masked lane-edge stores.
    B2, n2, h2, w2 = 2, 3, 5, 7
    x_r = jax.random.normal(kx, (B2, n2, h2, w2), dtype=jnp.float32)
    w_r = jax.random.normal(kw, (1, n2, h2, w2), dtype=jnp.float32)
    out_r = jax.block_until_ready(fusion_layer(x_r, w_r, force_pallas=True))
    assert jnp.allclose(out_r, x_r * w_r, atol=1e-6, rtol=1e-6)

    print("KERNEL_OK")
</pallas_src>

<mosaic_0001>
module attributes {stable_mosaic.version = 11 : i64} {
  func.func @_fusion_kernel(%arg0: i32, %arg1: i32, %arg2: memref<2x1024xf32, #tpu.memory_space<vmem>>, %arg3: memref<1x1024xf32, #tpu.memory_space<vmem>>, %arg4: memref<2x1024xf32, #tpu.memory_space<vmem>>) attributes {dimension_semantics = [#tpu.dimension_semantics<parallel>, #tpu.dimension_semantics<parallel>], iteration_bounds = array<i64: 1, 1>, scalar_prefetch = 0 : i64, scratch_operands = 0 : i64, tpu.core_type = #tpu.core_type<tc>, window_params = [{transform_indices = @transform_0, window_bounds = array<i64: 2, 1024>}, {transform_indices = @transform_1, window_bounds = array<i64: 1, 1024>}, {transform_indices = @transform_2, window_bounds = array<i64: 2, 1024>}]} {
    %c0 = arith.constant 0 : index
    %c0_0 = arith.constant 0 : index
    %0 = vector.load %arg2[%c0, %c0_0] : memref<2x1024xf32, #tpu.memory_space<vmem>>, vector<2x1024xf32>
    %c0_1 = arith.constant 0 : index
    %c0_2 = arith.constant 0 : index
    %1 = vector.load %arg3[%c0_1, %c0_2] : memref<1x1024xf32, #tpu.memory_space<vmem>>, vector<1x1024xf32>
    %2 = vector.broadcast %1 : vector<1x1024xf32> to vector<2x1024xf32>
    %3 = arith.mulf %0, %2 : vector<2x1024xf32>
    %c0_3 = arith.constant 0 : index
    %c0_4 = arith.constant 0 : index
    %4 = vector.load %arg4[%c0_3, %c0_4] : memref<2x1024xf32, #tpu.memory_space<vmem>>, vector<2x1024xf32>
    tpu.vector_store %arg4[%c0_3, %c0_4], %3 {strides = array<i32>} : memref<2x1024xf32, #tpu.memory_space<vmem>>, vector<2x1024xf32>,
    return
  }
  func.func @transform_0(%arg0: i32, %arg1: i32) -> (i32, i32) {
    %c0_i32 = arith.constant 0 : i32
    return %arg1, %arg0 : i32, i32
  }
  func.func @transform_1(%arg0: i32, %arg1: i32) -> (i32, i32) {
    %c0_i32 = arith.constant 0 : i32
    %c0_i32_0 = arith.constant 0 : i32
    return %c0_i32, %arg0 : i32, i32
  }
  func.func @transform_2(%arg0: i32, %arg1: i32) -> (i32, i32) {
    %c0_i32 = arith.constant 0 : i32
    return %arg1, %arg0 : i32, i32
  }
}

</mosaic_0001>

<llo_original>
// kernel: tpu_custom_call.1
$region0: #{tpu_custom_call.1}
  #allocation0 [shape = 'u32[]', space=smem, size = 0x4, offset = 0x4, fixed_abs, tag = 'smem constant byte address 0x4 - core index']
  #allocation1 [shape = 'u32[72,128]{1,0:T(1,128)}', space=vmem, size = 0x9000, scoped, tag = 'internal scratch']
  %s0 = inlined_call_operand.hbm [shape: f32[2,1024], index: 0, kind: input, shape index: {}]
  %s1 = inlined_call_operand.hbm [shape: f32[1,1024], index: 1, kind: input, shape index: {}]
  %s2 = inlined_call_operand.hbm [shape: f32[2,1024], index: 2, kind: output, shape index: {}]
  %s3 = sld [smem:[#allocation0]]
  $region26: #{tpu_custom_call.1} parent=0
    _
  %s5 = ssub.s32 1, %s3
  %s6 = scalar_select 0, %s5, %s3
  $region1: #{tpu_custom_call.1} parent=0
    #allocation2 [shape = 'u8[8192]{0}', space=vmem, size = 0x2000, scoped, tag = 'input window, operand 0, single buffered']
    #allocation3 [shape = 's32[1]{0}', space=sflag, size = 0x4, scoped, tag = 'scoped memory for tpu_custom_call.1']
    #allocation4 [shape = 's32[1]{0}', space=sflag, size = 0x4, scoped, tag = 'scoped memory for tpu_custom_call.1']
    #allocation5 [shape = 'u8[4096]{0}', space=vmem, size = 0x1000, scoped, tag = 'input window, operand 1, single buffered']
    #allocation6 [shape = 's32[1]{0}', space=sflag, size = 0x4, scoped, tag = 'scoped memory for tpu_custom_call.1']
    #allocation7 [shape = 'u8[8192]{0}', space=vmem, size = 0x2000, scoped, tag = 'output window, operand 0, single buffered']
    %7 = vsyncpa [#allocation3], 0
    %8 = vsyncpa [#allocation6], 0
    %9 = vsyncpa [#allocation4], 0
    // Predicated region
    $region2: #{tpu_custom_call.1} parent=1 // pred_check
      _
    $region3: #{tpu_custom_call.1} parent=1 // pred_check_branch
      %11 = sbr.rel (0) target = $region5
    $region4: #{tpu_custom_call.1} parent=1 // pred_region
      %13 = vsyncadd [#allocation3], 0
      %s15 = sshll.u32 %s0, 4
      %s16 = int_to_ptr.hbm [resolvable:$true] %s15
      %s17 = sshll.u32 [#allocation2], 4
      %s18 = int_to_ptr.vmem [resolvable:$true] %s17
      %20 = dma.hbm_to_vmem [thread:$0]  %s16, 256, %s18, [#allocation3]
    $region5: #{tpu_custom_call.1} parent=1 // pred_fallthru
      _
    // Predicated region
    $region6: #{tpu_custom_call.1} parent=1 // pred_check
      _
    $region7: #{tpu_custom_call.1} parent=1 // pred_check_branch
      %22 = sbr.rel (0) target = $region9
    $region8: #{tpu_custom_call.1} parent=1 // pred_region
      %24 = vsyncadd [#allocation6], 0
      %s26 = sshll.u32 %s1, 4
      %s27 = int_to_ptr.hbm [resolvable:$true] %s26
      %s28 = sshll.u32 [#allocation5], 4
      %s29 = int_to_ptr.vmem [resolvable:$true] %s28
      %31 = dma.hbm_to_vmem [thread:$0]  %s27, 128, %s29, [#allocation6]
    $region9: #{tpu_custom_call.1} parent=1 // pred_fallthru
      _
    // Predicated region
    $region10: #{tpu_custom_call.1} parent=1 // pred_check
      _
    $region11: #{tpu_custom_call.1} parent=1 // pred_check_branch
      %33 = sbr.rel (0) target = $region13
    $region12: #{tpu_custom_call.1} parent=1 // pred_region
      %35 = dma.done [#allocation3], 256
    $region13: #{tpu_custom_call.1} parent=1 // pred_fallthru
      _
    // Predicated region
    $region14: #{tpu_custom_call.1} parent=1 // pred_check
      _
    $region15: #{tpu_custom_call.1} parent=1 // pred_check_branch
      %37 = sbr.rel (0) target = $region17
    $region16: #{tpu_custom_call.1} parent=1 // pred_region
      %39 = dma.done [#allocation6], 128
    $region17: #{tpu_custom_call.1} parent=1 // pred_fallthru
      _
    %v40 = vld [vmem:[#allocation2] sm:$0xff]
    %v41 = vld [vmem:[#allocation2 + $0x8] sm:$0xff]
    %v42 = vld [vmem:[#allocation5] sm:$0xff]
    %v44 = vperm.slane %v42, 0
    %v45 = vperm.slane %v42, 1
    %v46 = vperm.slane %v42, 2
    %v47 = vperm.slane %v42, 3
    %v48 = vperm.slane %v42, 4
    %v49 = vperm.slane %v42, 5
    %v50 = vperm.slane %v42, 6
    %v51 = vperm.slane %v42, 7
    %v52 = vrot.slane %v45, 6
    %v53 = vrot.slane %v46, 4
    %v54 = vrot.slane %v47, 2
    %v55 = vrot.slane %v49, 6
    %v56 = vrot.slane %v50, 4
    %v57 = vrot.slane %v51, 2
    %vm58 = vcmask 1041408
    %v59 = vsel %vm58, %v44, %v52
    %vm60 = vcmask 1045508
    %v61 = vsel %vm60, %v53, %v54
    %vm62 = vcmask 1043456
    %v63 = vsel %vm62, %v59, %v61
    %v64 = vsel %vm58, %v48, %v55
    %v65 = vsel %vm60, %v56, %v57
    %v66 = vsel %vm62, %v64, %v65
    %v69 = vmul.f32 %v40, %v63
    %v70 = vmul.f32 %v41, %v66
    %71 = vst [vmem:[#allocation7] sm:$0xff] %v69
    %72 = vst [vmem:[#allocation7 + $0x8] sm:$0xff] %v70
    // Predicated region
    $region18: #{tpu_custom_call.1} parent=1 // pred_check
      _
    $region19: #{tpu_custom_call.1} parent=1 // pred_check_branch
      %74 = sbr.rel (0) target = $region21
    $region20: #{tpu_custom_call.1} parent=1 // pred_region
      %76 = vsyncadd [#allocation4], 0
      %s78 = sshll.u32 [#allocation7], 4
      %s79 = int_to_ptr.vmem [resolvable:$true] %s78
      %s80 = sshll.u32 %s2, 4
      %s81 = int_to_ptr.hbm [resolvable:$true] %s80
      %83 = dma.vmem_to_hbm [thread:$0]  %s79, 256, %s81, [#allocation4]
    $region21: #{tpu_custom_call.1} parent=1 // pred_fallthru
      _
    // Predicated region
    $region22: #{tpu_custom_call.1} parent=1 // pred_check
      _
    $region23: #{tpu_custom_call.1} parent=1 // pred_check_branch
      %85 = sbr.rel (0) target = $region25
    $region24: #{tpu_custom_call.1} parent=1 // pred_region
      %87 = dma.done [#allocation4], 256
    $region25: #{tpu_custom_call.1} parent=1 // pred_fallthru
      _
    %88 = vsyncpa [#allocation3], 1
    %89 = vsyncpa [#allocation6], 1
    %90 = vsyncpa [#allocation4], 1

</llo_original>
